<compile_context>
chip_gen: v5e
topology: v5e:2x2
jax: 0.10.0
libtpu: 0.0.40
codegen_flags: <defaults>
</compile_context>

<pallas_src>
import functools

import jax
import jax.numpy as jnp
from jax.experimental import pallas as pl
from jax.experimental.pallas import tpu as pltpu

HEADS = 8
HIDDEN = 32
NEG_SLOPE = 0.2          # GATConv LeakyReLU negative slope
PROJ_MAX_MULT = 8        # projection tile is up to 8x the attention tile


def _round_up(v, m):
    return ((v + m - 1) // m) * m


def _pick_proj_tile(n, base):
    for k in range(PROJ_MAX_MULT, 0, -1):
        t = base * k
        if n % t == 0:
            return t
    return base


def _tpu_defaults():
    # v5e/v6e (128 MiB VMEM): larger destination tiles + higher scoped limit.
    # v7x (64 MiB VMEM) / unknown: conservative 256-row tiles / 48 MiB.
    tile, vmem_limit = 256, 48 * 1024 * 1024
    try:
        info = pltpu.get_tpu_info()
        if getattr(info, "vmem_capacity_bytes", 0) >= 100 * 1024 * 1024:
            tile, vmem_limit = 512, 80 * 1024 * 1024
    except Exception:
        pass
    return tile, vmem_limit


def _const_spec(shape):
    # Full-array block, constant across the 1-D grid (stays resident).
    return pl.BlockSpec(shape, lambda i: (0,) * len(shape))


def _params(vmem_limit, semantics=("parallel",)):
    return pltpu.CompilerParams(dimension_semantics=semantics,
                                vmem_limit_bytes=vmem_limit)


# --------------------------------------------------------------------------- #
# Kernels
# --------------------------------------------------------------------------- #
def _project_kernel(x_ref, w_ref, watt_ref, xp_ref, att_ref):
    # xp = x @ W (bf16 MXU inputs, f32 acc, lane-dense bf16 store) and the
    # folded per-head attention scores [a_src | a_dst] = x @ W_att ([T, 2H] f32).
    xb = x_ref[...].astype(jnp.bfloat16)
    xp_ref[...] = jnp.dot(xb, w_ref[...],
                          preferred_element_type=jnp.float32).astype(jnp.bfloat16)
    att_ref[...] = jnp.dot(xb, watt_ref[...], preferred_element_type=jnp.float32)


def _gat_attn_kernel(xp_all_ref, adj_ref, asrc_ref, adst_ref, bias_ref, out_ref,
                     *, heads, apply_elu):
    # xp_all_ref: [H, N, C] bf16  head-major projected features (all sources)
    # adj_ref   : [T, N]    int8  0/1 adjacency rows of this destination tile
    # asrc_ref  : [H, N]    f32   precomputed source attention scores
    # adst_ref  : [T, H]    f32   precomputed destination attention scores (tile)
    # bias_ref  : [1, H*C]  f32
    # out_ref   : [T, H*C]  bf16/f32
    neg = (adj_ref[...].astype(jnp.float32) - 1.0) * jnp.float32(1e30)  # [T, N]
    a_src = asrc_ref[...]                                               # [H, N]
    a_dst = adst_ref[...]                                               # [T, H]

    outs = []
    for h in range(heads):                      # static per-head loop: only a
        e = a_dst[:, h:h + 1] + a_src[h:h + 1, :]   # [T, N] slab live per head
        e = jnp.where(e > 0.0, e, NEG_SLOPE * e) + neg
        m = jnp.max(e, axis=-1, keepdims=True)
        p = jnp.exp(e - m)                          # masked entries underflow to 0
        l = jnp.maximum(jnp.sum(p, axis=-1, keepdims=True), 1e-16)
        # Aggregate with the UNNORMALIZED exp, normalize the [T, C] result
        # (EUP reciprocal) instead of dividing the [T, N] slab.
        agg = jnp.dot(p.astype(jnp.bfloat16), xp_all_ref[h],
                      preferred_element_type=jnp.float32)               # [T, C]
        outs.append(agg * pl.reciprocal(l, approx=True))

    out = jnp.concatenate(outs, axis=-1) + bias_ref[...]                # [T, H*C]
    if apply_elu:
        out = jnp.where(out > 0.0, out, jnp.exp(jnp.minimum(out, 0.0)) - 1.0)
    out_ref[...] = out.astype(out_ref.dtype)


def _pool_fc_kernel(h_ref, pool_ref, fcw_ref, fcb_ref, out_ref, acc_ref):
    # global_mean_pool as a tiled matmul with the [G, N] mean-pool matrix
    # (reduction over node tiles into an f32 accumulator), then fc at the end.
    @pl.when(pl.program_id(0) == 0)
    def _init():
        acc_ref[...] = jnp.zeros_like(acc_ref)

    acc_ref[...] += jnp.dot(pool_ref[...].astype(jnp.bfloat16),
                            h_ref[...].astype(jnp.bfloat16),
                            preferred_element_type=jnp.float32)

    @pl.when(pl.program_id(0) == pl.num_programs(0) - 1)
    def _finish():
        out_ref[...] = jnp.dot(acc_ref[...].astype(jnp.bfloat16),
                               fcw_ref[...].astype(jnp.bfloat16),
                               preferred_element_type=jnp.float32) + fcb_ref[...]


# --------------------------------------------------------------------------- #
# Wrappers
# --------------------------------------------------------------------------- #
def gat_layer(x, w, att_src, att_dst, bias, adj, attn_tile, proj_tile,
              vmem_limit, apply_elu, out_dtype):
    n, f = x.shape
    hc = HEADS * HIDDEN

    # Fold the per-head attention dot products into the projection:
    #   a_src[j, h] = (x[j] @ W_h) . att_src[h] = x[j] @ (W_h @ att_src[h]).
    w_heads = w.reshape(f, HEADS, HIDDEN)
    w_att = jnp.concatenate([jnp.einsum("fhc,hc->fh", w_heads, att_src),
                             jnp.einsum("fhc,hc->fh", w_heads, att_dst)],
                            axis=1)                                     # [F, 2H]

    xp, att = pl.pallas_call(
        _project_kernel,
        grid=(n // proj_tile,),
        in_specs=[pl.BlockSpec((proj_tile, f), lambda i: (i, 0)),
                  _const_spec((f, hc)),
                  _const_spec((f, 2 * HEADS))],
        out_specs=[pl.BlockSpec((proj_tile, hc), lambda i: (i, 0)),
                   pl.BlockSpec((proj_tile, 2 * HEADS), lambda i: (i, 0))],
        out_shape=[jax.ShapeDtypeStruct((n, hc), jnp.bfloat16),
                   jax.ShapeDtypeStruct((n, 2 * HEADS), jnp.float32)],
        compiler_params=_params(vmem_limit),
    )(x, w.astype(jnp.bfloat16), w_att.astype(jnp.bfloat16))

    # Wrapper-side layout plumbing (XLA): head-major features + split scores.
    xp_hm = jnp.transpose(xp.reshape(n, HEADS, HIDDEN), (1, 0, 2))      # [H, N, C]
    a_src = jnp.transpose(att[:, :HEADS])                               # [H, N]
    a_dst = att[:, HEADS:]                                              # [N, H]

    kernel = functools.partial(_gat_attn_kernel, heads=HEADS, apply_elu=apply_elu)
    return pl.pallas_call(
        kernel,
        grid=(n // attn_tile,),
        in_specs=[_const_spec((HEADS, n, HIDDEN)),                      # all sources
                  pl.BlockSpec((attn_tile, n), lambda i: (i, 0)),       # adj rows
                  _const_spec((HEADS, n)),                              # a_src
                  pl.BlockSpec((attn_tile, HEADS), lambda i: (i, 0)),   # a_dst rows
                  _const_spec((1, hc))],                                # bias
        out_specs=pl.BlockSpec((attn_tile, hc), lambda i: (i, 0)),
        out_shape=jax.ShapeDtypeStruct((n, hc), out_dtype),
        compiler_params=_params(vmem_limit),
    )(xp_hm, adj, a_src, a_dst, bias)


def pool_and_fc(h, pool_mat, fc_w, fc_b, tile, vmem_limit):
    n, hc = h.shape
    g = pool_mat.shape[0]
    ncls = fc_w.shape[1]
    return pl.pallas_call(
        _pool_fc_kernel,
        grid=(n // tile,),
        in_specs=[pl.BlockSpec((tile, hc), lambda i: (i, 0)),
                  pl.BlockSpec((g, tile), lambda i: (0, i)),
                  _const_spec(fc_w.shape),
                  _const_spec(fc_b.shape)],
        out_specs=_const_spec((g, ncls)),
        out_shape=jax.ShapeDtypeStruct((g, ncls), jnp.float32),
        scratch_shapes=[pltpu.VMEM((g, hc), jnp.float32)],
        compiler_params=_params(vmem_limit, ("arbitrary",)),
    )(h, pool_mat, fc_w, fc_b)


def gat_for_graph_forward(params, x, edge_index, batch, num_graphs):
    attn_base, vmem_limit = _tpu_defaults()
    n_real = x.shape[0]
    if n_real <= attn_base:
        attn_tile = _round_up(max(n_real, 8), 8)
        n = attn_tile
    else:
        attn_tile = attn_base
        n = _round_up(n_real, attn_base)
    proj_tile = _pick_proj_tile(n, attn_tile)
    pad = n - n_real

    x = jnp.pad(x.astype(jnp.float32), ((0, pad), (0, 0)))
    batch_p = jnp.concatenate([batch.astype(jnp.int32),
                               -jnp.ones((pad,), jnp.int32)])

    # Dense 0/1 adjacency stored as int8 (halves the dominant N^2 DMA stream):
    # adj[dst, src] = 1 per edge, plus self loops (also on padded rows so every
    # softmax row is non-empty).
    src, dst = edge_index[0], edge_index[1]
    adj = jnp.zeros((n, n), jnp.float32).at[dst, src].set(1.0)
    adj = adj.at[jnp.arange(n), jnp.arange(n)].set(1.0)
    adj = adj.astype(jnp.int8)

    # global_mean_pool matrix: pool[g, i] = 1/|graph g| if batch[i] == g
    # (padded nodes get zero weight).
    one_hot = (batch_p[None, :] == jnp.arange(num_graphs)[:, None]).astype(jnp.float32)
    counts = jnp.maximum(one_hot.sum(axis=1, keepdims=True), 1.0)
    pool_mat = one_hot / counts

    # dropout(p=0.6) layers are identity in eval mode.
    h = gat_layer(x, params["w1"], params["as1"], params["ad1"], params["b1"],
                  adj, attn_tile, proj_tile, vmem_limit, apply_elu=True,
                  out_dtype=jnp.bfloat16)
    h = gat_layer(h, params["w2"], params["as2"], params["ad2"], params["b2"],
                  adj, attn_tile, proj_tile, vmem_limit, apply_elu=True,
                  out_dtype=jnp.bfloat16)
    h = gat_layer(h, params["w3"], params["as3"], params["ad3"], params["b3"],
                  adj, attn_tile, proj_tile, vmem_limit, apply_elu=False,
                  out_dtype=jnp.float32)
    return pool_and_fc(h, pool_mat, params["fc_w"], params["fc_b"],
                       attn_tile, vmem_limit)


if __name__ == "__main__":
    num_features, num_classes = 16, 4
    nodes_per_graph, num_graphs = 8, 2
    n = nodes_per_graph * num_graphs
    hc = HEADS * HIDDEN  # 256

    keys = iter(jax.random.split(jax.random.PRNGKey(0), 16))

    def w(shape, scale=0.1):
        return (scale * jax.random.normal(next(keys), shape)).astype(jnp.float32)

    params = {
        # gat1: Linear(num_features, H*hidden, bias=False), att_src/dst [H, C], bias [1, H*C]
        "w1": w((num_features, hc)), "as1": w((HEADS, HIDDEN)),
        "ad1": w((HEADS, HIDDEN)), "b1": w((1, hc)),
        # gat2 / gat3: Linear(H*hidden, H*hidden, bias=False)
        "w2": w((hc, hc), 0.05), "as2": w((HEADS, HIDDEN)),
        "ad2": w((HEADS, HIDDEN)), "b2": w((1, hc)),
        "w3": w((hc, hc), 0.05), "as3": w((HEADS, HIDDEN)),
        "ad3": w((HEADS, HIDDEN)), "b3": w((1, hc)),
        # fc: Linear(H*hidden, num_classes)
        "fc_w": w((hc, num_classes)), "fc_b": w((1, num_classes)),
    }

    x = jax.random.normal(next(keys), (n, num_features), jnp.float32)

    # Two ring graphs of 8 nodes each, undirected (both directions stored).
    srcs, dsts = [], []
    for g in range(num_graphs):
        base = g * nodes_per_graph
        for i in range(nodes_per_graph):
            a, b = base + i, base + (i + 1) % nodes_per_graph
            srcs += [a, b]
            dsts += [b, a]
    edge_index = jnp.array([srcs, dsts], dtype=jnp.int32)   # [2, 32]
    batch = jnp.repeat(jnp.arange(num_graphs, dtype=jnp.int32), nodes_per_graph)

    out = gat_for_graph_forward(params, x, edge_index, batch, num_graphs)
    out = jax.block_until_ready(out)
    assert out.shape == (num_graphs, num_classes)
    assert bool(jnp.all(jnp.isfinite(out)))
    print("KERNEL_OK")
</pallas_src>

<mosaic_0001>
module attributes {stable_mosaic.version = 11 : i64} {
  func.func @_project_kernel(%arg0: i32, %arg1: memref<16x16xf32, #tpu.memory_space<vmem>>, %arg2: memref<16x256xbf16, #tpu.memory_space<vmem>>, %arg3: memref<16x16xbf16, #tpu.memory_space<vmem>>, %arg4: memref<16x256xbf16, #tpu.memory_space<vmem>>, %arg5: memref<16x16xf32, #tpu.memory_space<vmem>>) attributes {dimension_semantics = [#tpu.dimension_semantics<parallel>], iteration_bounds = array<i64: 1>, scalar_prefetch = 0 : i64, scratch_operands = 0 : i64, tpu.core_type = #tpu.core_type<tc>, window_params = [{transform_indices = @transform_0, window_bounds = array<i64: 16, 16>}, {pipeline_mode = #tpu.pipeline_mode<synchronous>, transform_indices = @transform_1, window_bounds = array<i64: 16, 256>}, {pipeline_mode = #tpu.pipeline_mode<synchronous>, transform_indices = @transform_2, window_bounds = array<i64: 16, 16>}, {transform_indices = @transform_3, window_bounds = array<i64: 16, 256>}, {transform_indices = @transform_4, window_bounds = array<i64: 16, 16>}]} {
    %c0 = arith.constant 0 : index
    %c0_0 = arith.constant 0 : index
    %0 = vector.load %arg1[%c0, %c0_0] : memref<16x16xf32, #tpu.memory_space<vmem>>, vector<16x16xf32>
    %1 = arith.truncf %0 : vector<16x16xf32> to vector<16x16xbf16>
    %c0_1 = arith.constant 0 : index
    %c0_2 = arith.constant 0 : index
    %2 = vector.load %arg2[%c0_1, %c0_2] : memref<16x256xbf16, #tpu.memory_space<vmem>>, vector<16x256xbf16>
    %cst = arith.constant dense<0.000000e+00> : vector<16x256xf32>
    %3 = tpu.matmul %1, %2, %cst {dimension_numbers = #tpu.dot_dimension_numbers<[1], [0], [0], [1], [0, 0, 1, 1], [], []>} : vector<16x16xbf16>, vector<16x256xbf16>, vector<16x256xf32> -> vector<16x256xf32>
    %4 = arith.truncf %3 : vector<16x256xf32> to vector<16x256xbf16>
    %c0_3 = arith.constant 0 : index
    %c0_4 = arith.constant 0 : index
    %5 = vector.load %arg4[%c0_3, %c0_4] : memref<16x256xbf16, #tpu.memory_space<vmem>>, vector<16x256xbf16>
    tpu.vector_store %arg4[%c0_3, %c0_4], %4 {strides = array<i32>} : memref<16x256xbf16, #tpu.memory_space<vmem>>, vector<16x256xbf16>,
    %c0_5 = arith.constant 0 : index
    %c0_6 = arith.constant 0 : index
    %6 = vector.load %arg3[%c0_5, %c0_6] : memref<16x16xbf16, #tpu.memory_space<vmem>>, vector<16x16xbf16>
    %cst_7 = arith.constant dense<0.000000e+00> : vector<16x16xf32>
    %7 = tpu.matmul %1, %6, %cst_7 {dimension_numbers = #tpu.dot_dimension_numbers<[1], [0], [0], [1], [0, 0, 1, 1], [], []>} : vector<16x16xbf16>, vector<16x16xbf16>, vector<16x16xf32> -> vector<16x16xf32>
    %c0_8 = arith.constant 0 : index
    %c0_9 = arith.constant 0 : index
    %8 = vector.load %arg5[%c0_8, %c0_9] : memref<16x16xf32, #tpu.memory_space<vmem>>, vector<16x16xf32>
    tpu.vector_store %arg5[%c0_8, %c0_9], %7 {strides = array<i32>} : memref<16x16xf32, #tpu.memory_space<vmem>>, vector<16x16xf32>,
    return
  }
  func.func @transform_0(%arg0: i32) -> (i32, i32) {
    %c0_i32 = arith.constant 0 : i32
    %c0_i32_0 = arith.constant 0 : i32
    return %arg0, %c0_i32 : i32, i32
  }
  func.func @transform_1(%arg0: i32) -> (i32, i32) {
    %c0_i32 = arith.constant 0 : i32
    %c0_i32_0 = arith.constant 0 : i32
    %c0_i32_1 = arith.constant 0 : i32
    return %c0_i32, %c0_i32_0 : i32, i32
  }
  func.func @transform_2(%arg0: i32) -> (i32, i32) {
    %c0_i32 = arith.constant 0 : i32
    %c0_i32_0 = arith.constant 0 : i32
    %c0_i32_1 = arith.constant 0 : i32
    return %c0_i32, %c0_i32_0 : i32, i32
  }
  func.func @transform_3(%arg0: i32) -> (i32, i32) {
    %c0_i32 = arith.constant 0 : i32
    %c0_i32_0 = arith.constant 0 : i32
    return %arg0, %c0_i32 : i32, i32
  }
  func.func @transform_4(%arg0: i32) -> (i32, i32) {
    %c0_i32 = arith.constant 0 : i32
    %c0_i32_0 = arith.constant 0 : i32
    return %arg0, %c0_i32 : i32, i32
  }
}

</mosaic_0001>

<llo_original>
// kernel: tpu_custom_call.1
$region0: #{tpu_custom_call.1}
  #allocation0 [shape = 'u32[]', space=smem, size = 0x4, offset = 0x4, fixed_abs, tag = 'smem constant byte address 0x4 - core index']
  #allocation1 [shape = 'u32[72,128]{1,0:T(1,128)}', space=vmem, size = 0x9000, scoped, tag = 'internal scratch']
  %s0 = inlined_call_operand.hbm [shape: f32[16,16], index: 0, kind: input, shape index: {}]
  %s1 = inlined_call_operand.hbm [shape: bf16[16,256], index: 1, kind: input, shape index: {}]
  %s2 = inlined_call_operand.hbm [shape: bf16[16,16], index: 2, kind: input, shape index: {}]
  %s3 = inlined_call_operand.hbm [shape: bf16[16,256], index: 3, kind: output, shape index: {0}]
  %s4 = inlined_call_operand.hbm [shape: f32[16,16], index: 4, kind: output, shape index: {1}]
  %5 = xla_tuple %s3, %s4
  %s6 = sld [smem:[#allocation0]]
  $region42: #{tpu_custom_call.1} parent=0
    _
  %s8 = ssub.s32 1, %s6
  %s9 = scalar_select 0, %s8, %s6
  $region1: #{tpu_custom_call.1} parent=0
    #allocation2 [shape = 'u8[8192]{0}', space=vmem, size = 0x2000, scoped, tag = 'input window, operand 0, single buffered']
    #allocation3 [shape = 's32[1]{0}', space=sflag, size = 0x4, scoped, tag = 'scoped memory for tpu_custom_call.1']
    #allocation4 [shape = 's32[1]{0}', space=sflag, size = 0x4, scoped, tag = 'scoped memory for tpu_custom_call.1']
    #allocation5 [shape = 'u8[8192]{0}', space=vmem, size = 0x2000, scoped, tag = 'input window, operand 1, single buffered']
    #allocation6 [shape = 's32[1]{0}', space=sflag, size = 0x4, scoped, tag = 'scoped memory for tpu_custom_call.1']
    #allocation7 [shape = 'u8[4096]{0}', space=vmem, size = 0x1000, scoped, tag = 'input window, operand 2, single buffered']
    #allocation8 [shape = 'u8[8192]{0}', space=vmem, size = 0x2000, scoped, tag = 'output window, operand 0, single buffered']
    #allocation9 [shape = 'u8[8192]{0}', space=vmem, size = 0x2000, scoped, tag = 'output window, operand 1, single buffered']
    #allocation10 [shape = 's32[1]{0}', space=sflag, size = 0x4, scoped, tag = 'scoped memory for tpu_custom_call.1']
    %10 = vsyncpa [#allocation3], 0
    %11 = vsyncpa [#allocation6], 0
    %12 = vsyncpa [#allocation4], 0
    %13 = vsyncpa [#allocation10], 0
    // Predicated region
    $region2: #{tpu_custom_call.1} parent=1 // pred_check
      _
    $region3: #{tpu_custom_call.1} parent=1 // pred_check_branch
      %15 = sbr.rel (0) target = $region5
    $region4: #{tpu_custom_call.1} parent=1 // pred_region
      %17 = vsyncadd [#allocation3], 0
      %s18 = sshll.u32 %s0, 4
      %s19 = int_to_ptr.hbm [resolvable:$true] %s18
      %s20 = sshll.u32 [#allocation2], 4
      %s21 = int_to_ptr.vmem [resolvable:$true] %s20
      %26 = dma.hbm_to_vmem [thread:$0]  %s19, 256, %s21, [#allocation3], 128, 128, 8
    $region5: #{tpu_custom_call.1} parent=1 // pred_fallthru
      _
    // Predicated region
    $region6: #{tpu_custom_call.1} parent=1 // pred_check
      _
    $region7: #{tpu_custom_call.1} parent=1 // pred_check_branch
      %28 = sbr.rel (0) target = $region9
    $region8: #{tpu_custom_call.1} parent=1 // pred_region
      %30 = vsyncadd [#allocation6], 0
      %s31 = sshll.u32 %s1, 4
      %s32 = int_to_ptr.hbm [resolvable:$true] %s31
      %s33 = sshll.u32 [#allocation5], 4
      %s34 = int_to_ptr.vmem [resolvable:$true] %s33
      %39 = dma.hbm_to_vmem [thread:$0]  %s32, 256, %s34, [#allocation6], 128, 128, 8
    $region9: #{tpu_custom_call.1} parent=1 // pred_fallthru
      _
    // Predicated region
    $region10: #{tpu_custom_call.1} parent=1 // pred_check
      _
    $region11: #{tpu_custom_call.1} parent=1 // pred_check_branch
      %41 = sbr.rel (0) target = $region13
    $region12: #{tpu_custom_call.1} parent=1 // pred_region
      %43 = vsyncadd [#allocation6], 0
      %s44 = sshll.u32 %s2, 4
      %s45 = int_to_ptr.hbm [resolvable:$true] %s44
      %s46 = sshll.u32 [#allocation7], 4
      %s47 = int_to_ptr.vmem [resolvable:$true] %s46
      %52 = dma.hbm_to_vmem [thread:$0]  %s45, 128, %s47, [#allocation6], 64, 64, 4
    $region13: #{tpu_custom_call.1} parent=1 // pred_fallthru
      _
    // Predicated region
    $region14: #{tpu_custom_call.1} parent=1 // pred_check
      _
    $region15: #{tpu_custom_call.1} parent=1 // pred_check_branch
      %54 = sbr.rel (0) target = $region17
    $region16: #{tpu_custom_call.1} parent=1 // pred_region
      %56 = dma.done [#allocation3], 256
    $region17: #{tpu_custom_call.1} parent=1 // pred_fallthru
      _
    // Predicated region
    $region18: #{tpu_custom_call.1} parent=1 // pred_check
      _
    $region19: #{tpu_custom_call.1} parent=1 // pred_check_branch
      %58 = sbr.rel (0) target = $region21
    $region20: #{tpu_custom_call.1} parent=1 // pred_region
      %60 = dma.done [#allocation6], 256
    $region21: #{tpu_custom_call.1} parent=1 // pred_fallthru
      _
    // Predicated region
    $region22: #{tpu_custom_call.1} parent=1 // pred_check
      _
    $region23: #{tpu_custom_call.1} parent=1 // pred_check_branch
      %62 = sbr.rel (0) target = $region25
    $region24: #{tpu_custom_call.1} parent=1 // pred_region
      %64 = dma.done [#allocation6], 128
    $region25: #{tpu_custom_call.1} parent=1 // pred_fallthru
      _
    %v66 = vld [vmem:[#allocation2] sm:$0xff]
    %v67 = vld [vmem:[#allocation2 + $0x8] sm:$0xff]
    %v68 = vpack.c.bf16 %v67, %v66
    %v69 = vld [vmem:[#allocation5] sm:$0xff]
    %v70 = vld [vmem:[#allocation5 + $0x8] sm:$0xff]
    %v73 = vunpack.c.l.b16 %v69
    %v74 = vunpack.c.h.b16 %v69
    %v75 = vunpack.c.l.b16 %v70
    %v76 = vunpack.c.h.b16 %v70
    %v77 = vpack.c.b16 %v75, %v73
    %v78 = vpack.c.b16 %v76, %v74
    %vm81 = vcmask 130048
    %v83 = vsel %vm81, %v68, 0
    %85 = vmatpush.bf16.msra.mxu0 0
    %86 = vmatpush.bf16.msra.mxu0 0
    %87 = vmatpush.bf16.msra.mxu0 0
    %88 = vmatpush.bf16.msra.mxu0 0
    %89 = vmatpush.bf16.msra.mxu0 0
    %90 = vmatpush.bf16.msra.mxu0 0
    %91 = vmatpush.bf16.msra.mxu0 0
    %92 = vmatpush.bf16.msra.mxu0 %v77
    %93 = vmatmul.bf16.gmra.mxu0 %v83
    %v94 = vpop.f32.mrf.mxu0
    %v95 = vadd.f32 0.0, %v94
    %v96 = vpop.f32.mrf.mxu0
    %v97 = vadd.f32 0.0, %v96
    %98 = vdwg.mxu0
    %99 = vmatpush.bf16.msra.mxu0 0
    %100 = vmatpush.bf16.msra.mxu0 0
    %101 = vmatpush.bf16.msra.mxu0 0
    %102 = vmatpush.bf16.msra.mxu0 0
    %103 = vmatpush.bf16.msra.mxu0 0
    %104 = vmatpush.bf16.msra.mxu0 0
    %105 = vmatpush.bf16.msra.mxu0 0
    %106 = vmatpush.bf16.msra.mxu0 %v78
    %107 = vmatmul.bf16.gmra.mxu0 %v83
    %v108 = vpop.f32.mrf.mxu0
    %v109 = vadd.f32 0.0, %v108
    %v110 = vpop.f32.mrf.mxu0
    %v111 = vadd.f32 0.0, %v110
    %112 = vdwg.mxu0
    %v113 = vpack.c.bf16 %v109, %v95
    %v114 = vpack.c.bf16 %v111, %v97
    %115 = vst [vmem:[#allocation8] sm:$0xff] %v113
    %116 = vst [vmem:[#allocation8 + $0x8] sm:$0xff] %v114
    %v117 = vld [vmem:[#allocation7] sm:$0xf]
    %v118 = vld [vmem:[#allocation7 + $0x4] sm:$0xf]
    %v121 = vunpack.c.l.b16 %v117
    %v122 = vunpack.c.l.b16 %v118
    %v123 = vpack.c.b16 %v122, %v121
    %125 = vmatpush.bf16.msra.mxu0 0
    %126 = vmatpush.bf16.msra.mxu0 0
    %127 = vmatpush.bf16.msra.mxu0 0
    %128 = vmatpush.bf16.msra.mxu0 0
    %129 = vmatpush.bf16.msra.mxu0 0
    %130 = vmatpush.bf16.msra.mxu0 0
    %131 = vmatpush.bf16.msra.mxu0 0
    %132 = vmatpush.bf16.msra.mxu0 %v123
    %133 = vmatmul.bf16.gmra.mxu0 %v83
    %v134 = vpop.f32.mrf.mxu0
    %v135 = vadd.f32 0.0, %v134
    %v136 = vpop.f32.mrf.mxu0
    %v137 = vadd.f32 0.0, %v136
    %138 = vdwg.mxu0
    %139 = vst.msk [vmem:[#allocation9] sm:$0xff] %vm81, %v135
    %140 = vst.msk [vmem:[#allocation9 + $0x8] sm:$0xff] %vm81, %v137
    // Predicated region
    $region26: #{tpu_custom_call.1} parent=1 // pred_check
      _
    $region27: #{tpu_custom_call.1} parent=1 // pred_check_branch
      %142 = sbr.rel (0) target = $region29
    $region28: #{tpu_custom_call.1} parent=1 // pred_region
      %144 = vsyncadd [#allocation4], 0
      %s145 = sshll.u32 [#allocation8], 4
      %s146 = int_to_ptr.vmem [resolvable:$true] %s145
      %s147 = sshll.u32 %s3, 4
      %s148 = int_to_ptr.hbm [resolvable:$true] %s147
      %153 = dma.vmem_to_hbm [thread:$0]  %s146, 256, %s148, [#allocation4], 128, 128, 8
    $region29: #{tpu_custom_call.1} parent=1 // pred_fallthru
      _
    // Predicated region
    $region30: #{tpu_custom_call.1} parent=1 // pred_check
      _
    $region31: #{tpu_custom_call.1} parent=1 // pred_check_branch
      %155 = sbr.rel (0) target = $region33
    $region32: #{tpu_custom_call.1} parent=1 // pred_region
      %157 = vsyncadd [#allocation10], 0
      %s158 = sshll.u32 [#allocation9], 4
      %s159 = int_to_ptr.vmem [resolvable:$true] %s158
      %s160 = sshll.u32 %s4, 4
      %s161 = int_to_ptr.hbm [resolvable:$true] %s160
      %166 = dma.vmem_to_hbm [thread:$0]  %s159, 256, %s161, [#allocation10], 128, 128, 8
    $region33: #{tpu_custom_call.1} parent=1 // pred_fallthru
      _
    // Predicated region
    $region34: #{tpu_custom_call.1} parent=1 // pred_check
      _
    $region35: #{tpu_custom_call.1} parent=1 // pred_check_branch
      %168 = sbr.rel (0) target = $region37
    $region36: #{tpu_custom_call.1} parent=1 // pred_region
      %170 = dma.done [#allocation4], 256
    $region37: #{tpu_custom_call.1} parent=1 // pred_fallthru
      _
    // Predicated region
    $region38: #{tpu_custom_call.1} parent=1 // pred_check
      _
    $region39: #{tpu_custom_call.1} parent=1 // pred_check_branch
      %172 = sbr.rel (0) target = $region41
    $region40: #{tpu_custom_call.1} parent=1 // pred_region
      %174 = dma.done [#allocation10], 256
    $region41: #{tpu_custom_call.1} parent=1 // pred_fallthru
      _
    %175 = vsyncpa [#allocation3], 1
    %176 = vsyncpa [#allocation6], 1
    %177 = vsyncpa [#allocation4], 1
    %178 = vsyncpa [#allocation10], 1

</llo_original>
